<compile_context>
chip_gen: v7x
topology: tpu7x:2x2x1
jax: 0.10.0
libtpu: 0.0.40
codegen_flags: <defaults>
</compile_context>

<pallas_src>
import functools
import math

import jax
import jax.numpy as jnp
from jax.experimental import pallas as pl
from jax.experimental.pallas import tpu as pltpu

NUM_CORES = 2        # megacore split of the instance axis (harmless on 1-core chips)
NEG_BIG = -1e30      # finite "-inf" (avoids inf - inf -> nan inside exp arguments)


def _round_up(x, m):
    return (x + m - 1) // m * m


def _bclassifier_kernel(feats_ref, watt_ref, batt_ref,
                        a_ref, mpart_ref, spart_ref, fpart_ref,
                        m_scr, s_scr, f_scr,
                        *, n_valid, need_mask, compute_dtype):
    core = pl.program_id(0)            # "parallel": half of the instance axis
    it = pl.program_id(1)              # "arbitrary": tile index within this core
    tpc = pl.num_programs(1)
    tile_n = feats_ref.shape[0]

    # ---- per-core init (each core's first tile) --------------------------
    @pl.when(it == 0)
    def _init():
        m_scr[...] = jnp.full(m_scr.shape, NEG_BIG, m_scr.dtype)
        s_scr[...] = jnp.zeros_like(s_scr)
        f_scr[...] = jnp.zeros_like(f_scr)

    feats_blk = feats_ref[...]                       # (TILE_N, D), as stored in HBM
    feats_f32 = feats_blk.astype(jnp.float32)        # accumulation path stays f32

    # logits[k, n] = <w_att[k, :], feats[n, :]> + b_att[k]    (K, TILE_N)
    # Same Q @ K^T dims pattern as flash attention; in-kernel cast for the MXU.
    logits = jax.lax.dot_general(
        watt_ref[...], feats_blk.astype(compute_dtype),
        (((1,), (1,)), ((), ())),
        preferred_element_type=jnp.float32) + batt_ref[...]

    if need_mask:
        col = (jax.lax.broadcasted_iota(jnp.int32, (1, tile_n), 1)
               + (core * tpc + it) * tile_n)
        valid = col < n_valid                         # (1, TILE_N), broadcast over K
        logits = jnp.where(valid, logits, NEG_BIG)

    # Raw (pre-softmax, scaled, masked) logits out, lane-dense (K, TILE_N).
    # Normalisation to A happens in the wrapper (fused with the final transpose).
    a_ref[...] = logits

    # ---- online softmax stats + flash-rescaled weighted-feature sum ------
    tile_max = jnp.max(logits, axis=1, keepdims=True)             # lane reduce (K,1)
    m_new = jnp.maximum(m_scr[...], tile_max)
    alpha = jnp.exp(m_scr[...] - m_new)
    p = jnp.exp(logits - m_new)                                   # (K, TILE_N)
    if need_mask:
        p = jnp.where(valid, p, 0.0)   # exact 0 even for an entirely padded tile
    s_scr[...] = alpha * s_scr[...] + jnp.sum(p, axis=1, keepdims=True)
    f_scr[...] = alpha * f_scr[...] + jnp.dot(p, feats_f32,
                                              preferred_element_type=jnp.float32)
    m_scr[...] = m_new

    # ---- per-core finalize: write flash partials --------------------------
    @pl.when(it == tpc - 1)
    def _fin():
        mpart_ref[...] = m_scr[...]
        spart_ref[...] = s_scr[...]
        fpart_ref[...] = f_scr[...]


def bclassifier_forward(feats, c, params, *, compute_dtype=jnp.bfloat16, tile_n=None):
    n, d = feats.shape
    k = c.shape[1]
    h = params["wq"].shape[1]

    # ---- tiny O(K*D) prologue in plain JAX --------------------------------
    # m_indices[0, :] of torch.sort(c, 0, descending=True) == per-class argmax row.
    idx = jnp.argmax(c, axis=0)
    m_feats = feats[idx]                                         # (K, D)
    q_max = m_feats @ params["wq"] + params["bq"]                # (K, H)
    scale = 1.0 / math.sqrt(h)
    w_att = (q_max @ params["wq"].T) * scale                     # (K, D)
    b_att = (q_max @ params["bq"].T) * scale                     # (K, 1)

    # ---- tile the instance axis -------------------------------------------
    if tile_n is not None:
        tile = max(128, (int(tile_n) // 128) * 128)
    else:
        rows = (2 << 20) // max(1, d * feats.dtype.itemsize)     # ~2 MiB feats / block
        tile = max(128, min(8192, (rows // 128) * 128))
    # don't use tiles larger than each core's share of the bag
    tile = min(tile, max(128, _round_up(-(-n // NUM_CORES), 128)))
    num_tiles = _round_up(-(-n // tile), NUM_CORES)
    tpc = num_tiles // NUM_CORES
    n_pad = num_tiles * tile

    feats_p = feats if n_pad == n else jnp.pad(feats, ((0, n_pad - n), (0, 0)))

    kernel = functools.partial(
        _bclassifier_kernel,
        n_valid=n, need_mask=(n_pad != n), compute_dtype=compute_dtype)

    grid_spec = pltpu.PrefetchScalarGridSpec(
        num_scalar_prefetch=0,
        grid=(NUM_CORES, tpc),
        in_specs=[
            pl.BlockSpec((tile, d), lambda cc, i: (cc * tpc + i, 0)),   # feats stream
            pl.BlockSpec((k, d), lambda cc, i: (0, 0)),                 # w_att resident
            pl.BlockSpec((k, 1), lambda cc, i: (0, 0)),                 # b_att resident
        ],
        out_specs=(
            pl.BlockSpec((k, tile), lambda cc, i: (0, cc * tpc + i)),   # raw logits (K,N)
            pl.BlockSpec((None, k, 1), lambda cc, i: (cc, 0, 0)),       # m partial / core
            pl.BlockSpec((None, k, 1), lambda cc, i: (cc, 0, 0)),       # s partial / core
            pl.BlockSpec((None, k, d), lambda cc, i: (cc, 0, 0)),       # f_acc partial
        ),
        scratch_shapes=[
            pltpu.VMEM((k, 1), jnp.float32),    # running max
            pltpu.VMEM((k, 1), jnp.float32),    # running sum(exp)
            pltpu.VMEM((k, d), jnp.float32),    # running sum(exp * feats)
        ],
    )

    a_raw, m_part, s_part, f_part = pl.pallas_call(
        kernel,
        out_shape=(
            jax.ShapeDtypeStruct((k, n_pad), jnp.float32),
            jax.ShapeDtypeStruct((NUM_CORES, k, 1), jnp.float32),
            jax.ShapeDtypeStruct((NUM_CORES, k, 1), jnp.float32),
            jax.ShapeDtypeStruct((NUM_CORES, k, d), jnp.float32),
        ),
        grid_spec=grid_spec,
        compiler_params=pltpu.CompilerParams(
            dimension_semantics=("parallel", "arbitrary"),
            vmem_limit_bytes=32 * 1024 * 1024),
    )(feats_p, w_att.astype(compute_dtype), b_att.astype(jnp.float32))

    # ---- tiny epilogue: combine per-core flash partials + Conv1d head -----
    m_fin = jnp.max(m_part, axis=0)                          # (K, 1)
    corr = jnp.exp(m_part - m_fin)                           # (CORES, K, 1)
    s_fin = jnp.sum(s_part * corr, axis=0)                   # (K, 1)
    f_sum = jnp.sum(f_part * corr, axis=0)                   # (K, D)
    b_mat = (f_sum @ params["wv"]) / s_fin + params["bv"]    # B = A^T V        (K, H)
    c_out = jnp.einsum("oih,ih->o", params["wc"], b_mat) + params["bc"][0]    # (K,)
    # A normalisation fused with the (K,N)->(N,K) transpose (exact division).
    a = (jnp.exp(a_raw[:, :n] - m_fin) / s_fin).T            # (N, K)
    return c_out.reshape(1, k), a, b_mat.reshape(1, k, h)


def reference_forward(feats, c, p):
    # Pure-JAX mirror of the PyTorch module (eval mode, dropout = 0).
    V = feats @ p["wv"] + p["bv"]
    Q = feats @ p["wq"] + p["bq"]
    idx = jnp.argmax(c, axis=0)
    m_feats = feats[idx]
    q_max = m_feats @ p["wq"] + p["bq"]
    A = Q @ q_max.T / jnp.sqrt(jnp.float32(Q.shape[1]))
    A = jax.nn.softmax(A, axis=0)
    B = A.T @ V
    C = jnp.einsum("oih,ih->o", p["wc"], B) + p["bc"][0]
    return C.reshape(1, -1), A, B.reshape(1, B.shape[0], B.shape[1])


def init_params(key, input_size, hid_size, output_class):
    ks = jax.random.split(key, 6)
    scale = 0.1
    return {
        # Linear weights stored transposed: (in, out)
        "wq": scale * jax.random.normal(ks[0], (input_size, hid_size), jnp.float32),
        "bq": scale * jax.random.normal(ks[1], (1, hid_size), jnp.float32),
        "wv": scale * jax.random.normal(ks[2], (input_size, hid_size), jnp.float32),
        "bv": scale * jax.random.normal(ks[3], (1, hid_size), jnp.float32),
        # Conv1d weight (C_out, C_in, kernel=hid), bias as a (1, C_out) row
        "wc": scale * jax.random.normal(ks[4], (output_class, output_class, hid_size),
                                        jnp.float32),
        "bc": scale * jax.random.normal(ks[5], (1, output_class), jnp.float32),
    }


if __name__ == "__main__":
    input_size, hid_size, output_class = 32, 32, 4
    key = jax.random.PRNGKey(0)

    def check(n_inst, compute_dtype, tile_n, tol):
        kf, kc, kp = jax.random.split(jax.random.fold_in(key, n_inst), 3)
        feats = jax.random.normal(kf, (n_inst, input_size), jnp.float32)
        c = jax.random.normal(kc, (n_inst, output_class), jnp.float32)
        params = init_params(kp, input_size, hid_size, output_class)

        C_out, A_out, B_out = bclassifier_forward(
            feats, c, params, compute_dtype=compute_dtype, tile_n=tile_n)
        jax.block_until_ready((C_out, A_out, B_out))

        C_ref, A_ref, B_ref = reference_forward(feats, c, params)
        assert C_out.shape == (1, output_class)
        assert A_out.shape == (n_inst, output_class)
        assert B_out.shape == (1, output_class, hid_size)
        assert jnp.allclose(C_out, C_ref, atol=tol, rtol=tol)
        assert jnp.allclose(A_out, A_ref, atol=tol, rtol=tol)
        assert jnp.allclose(B_out, B_ref, atol=tol, rtol=tol)

    # Tiny bag: one real tile + one fully-padded tile on the second "core".
    check(8, jnp.float32, tile_n=None, tol=2e-3)
    # Forced small tiles: multi-tile flash accumulation + last-tile masking.
    check(300, jnp.float32, tile_n=128, tol=2e-3)
    # Exact multiple of the auto tile: no-mask fast path.
    check(512, jnp.float32, tile_n=None, tol=2e-3)
    # bf16 logits-matmul path (f32 accumulation), auto tiling.
    check(300, jnp.bfloat16, tile_n=None, tol=2e-2)

    print("KERNEL_OK")
</pallas_src>

<mosaic_0001>
module attributes {stable_mosaic.version = 11 : i64} {
  func.func @_bclassifier_kernel(%arg0: i32, %arg1: i32, %arg2: memref<128x32xf32, #tpu.memory_space<vmem>>, %arg3: memref<4x32xf32, #tpu.memory_space<vmem>>, %arg4: memref<4x1xf32, #tpu.memory_space<vmem>>, %arg5: memref<4x128xf32, #tpu.memory_space<vmem>>, %arg6: memref<1x4x1xf32, #tpu.memory_space<vmem>>, %arg7: memref<1x4x1xf32, #tpu.memory_space<vmem>>, %arg8: memref<1x4x32xf32, #tpu.memory_space<vmem>>, %arg9: memref<4x1xf32, #tpu.memory_space<vmem>>, %arg10: memref<4x1xf32, #tpu.memory_space<vmem>>, %arg11: memref<4x32xf32, #tpu.memory_space<vmem>>) attributes {dimension_semantics = [#tpu.dimension_semantics<parallel>, #tpu.dimension_semantics<arbitrary>], iteration_bounds = array<i64: 2, 1>, scalar_prefetch = 0 : i64, scratch_operands = 3 : i64, tpu.core_type = #tpu.core_type<tc>, window_params = [{transform_indices = @transform_0, window_bounds = array<i64: 128, 32>}, {pipeline_mode = #tpu.pipeline_mode<synchronous>, transform_indices = @transform_1, window_bounds = array<i64: 4, 32>}, {pipeline_mode = #tpu.pipeline_mode<synchronous>, transform_indices = @transform_2, window_bounds = array<i64: 4, 1>}, {transform_indices = @transform_3, window_bounds = array<i64: 4, 128>}, {transform_indices = @transform_4, window_bounds = array<i64: 1, 4, 1>}, {transform_indices = @transform_5, window_bounds = array<i64: 1, 4, 1>}, {transform_indices = @transform_6, window_bounds = array<i64: 1, 4, 32>}]} {
    %c0_i32 = arith.constant 0 : i32
    %0 = arith.cmpi eq, %arg1, %c0_i32 : i32
    %1 = arith.extui %0 : i1 to i32
    %c0_i32_0 = arith.constant 0 : i32
    %2 = arith.cmpi ne, %1, %c0_i32_0 : i32
    scf.if %2 {
      %cst_29 = arith.constant -1.000000e+30 : f32
      %52 = vector.broadcast %cst_29 : f32 to vector<4x1xf32>
      %c0_30 = arith.constant 0 : index
      %c0_31 = arith.constant 0 : index
      %53 = vector.load %arg9[%c0_30, %c0_31] : memref<4x1xf32, #tpu.memory_space<vmem>>, vector<4x1xf32>
      tpu.vector_store %arg9[%c0_30, %c0_31], %52 {strides = array<i32>} : memref<4x1xf32, #tpu.memory_space<vmem>>, vector<4x1xf32>,
      %cst_32 = arith.constant 0.000000e+00 : f32
      %54 = vector.broadcast %cst_32 : f32 to vector<4x1xf32>
      %c0_33 = arith.constant 0 : index
      %c0_34 = arith.constant 0 : index
      %55 = vector.load %arg10[%c0_33, %c0_34] : memref<4x1xf32, #tpu.memory_space<vmem>>, vector<4x1xf32>
      tpu.vector_store %arg10[%c0_33, %c0_34], %54 {strides = array<i32>} : memref<4x1xf32, #tpu.memory_space<vmem>>, vector<4x1xf32>,
      %cst_35 = arith.constant 0.000000e+00 : f32
      %56 = vector.broadcast %cst_35 : f32 to vector<4x32xf32>
      %c0_36 = arith.constant 0 : index
      %c0_37 = arith.constant 0 : index
      %57 = vector.load %arg11[%c0_36, %c0_37] : memref<4x32xf32, #tpu.memory_space<vmem>>, vector<4x32xf32>
      tpu.vector_store %arg11[%c0_36, %c0_37], %56 {strides = array<i32>} : memref<4x32xf32, #tpu.memory_space<vmem>>, vector<4x32xf32>,
    } else {
    }
    %c0 = arith.constant 0 : index
    %c0_1 = arith.constant 0 : index
    %3 = vector.load %arg2[%c0, %c0_1] : memref<128x32xf32, #tpu.memory_space<vmem>>, vector<128x32xf32>
    %c0_2 = arith.constant 0 : index
    %c0_3 = arith.constant 0 : index
    %4 = vector.load %arg3[%c0_2, %c0_3] : memref<4x32xf32, #tpu.memory_space<vmem>>, vector<4x32xf32>
    %cst = arith.constant dense<0.000000e+00> : vector<4x128xf32>
    %5 = tpu.matmul %4, %3, %cst {dimension_numbers = #tpu.dot_dimension_numbers<[1], [1], [0], [0], [0, 0, 1, 0], [], []>} : vector<4x32xf32>, vector<128x32xf32>, vector<4x128xf32> -> vector<4x128xf32>
    %c0_4 = arith.constant 0 : index
    %c0_5 = arith.constant 0 : index
    %6 = vector.load %arg4[%c0_4, %c0_5] : memref<4x1xf32, #tpu.memory_space<vmem>>, vector<4x1xf32>
    %7 = vector.broadcast %6 : vector<4x1xf32> to vector<4x128xf32>
    %8 = arith.addf %5, %7 : vector<4x128xf32>
    %9 = tpu.iota {dimensions = array<i32: 1>} : vector<1x128xi32>
    %c1_i32 = arith.constant 1 : i32
    %10 = arith.muli %arg0, %c1_i32 : i32
    %11 = arith.addi %10, %arg1 : i32
    %c128_i32 = arith.constant 128 : i32
    %12 = arith.muli %11, %c128_i32 : i32
    %13 = vector.broadcast %12 : i32 to vector<1x128xi32>
    %14 = arith.addi %9, %13 : vector<1x128xi32>
    %c8_i32 = arith.constant 8 : i32
    %15 = vector.broadcast %c8_i32 : i32 to vector<1x128xi32>
    %16 = arith.cmpi slt, %14, %15 : vector<1x128xi32>
    %cst_6 = arith.constant -1.000000e+30 : f32
    %17 = vector.shape_cast %16 : vector<1x128xi1> to vector<1x128xi1>
    %18 = vector.broadcast %17 : vector<1x128xi1> to vector<4x128xi1>
    %19 = vector.broadcast %cst_6 : f32 to vector<4x128xf32>
    %20 = arith.select %18, %8, %19 : vector<4x128xi1>, vector<4x128xf32>
    %c0_7 = arith.constant 0 : index
    %c0_8 = arith.constant 0 : index
    %21 = vector.load %arg5[%c0_7, %c0_8] : memref<4x128xf32, #tpu.memory_space<vmem>>, vector<4x128xf32>
    tpu.vector_store %arg5[%c0_7, %c0_8], %20 {strides = array<i32>} : memref<4x128xf32, #tpu.memory_space<vmem>>, vector<4x128xf32>,
    %cst_9 = arith.constant dense<0xFF800000> : vector<4xf32>
    %22 = vector.multi_reduction <maximumf>, %20, %cst_9 [1] : vector<4x128xf32> to vector<4xf32>
    %23 = vector.shape_cast %22 : vector<4xf32> to vector<4x1xf32>
    %c0_10 = arith.constant 0 : index
    %c0_11 = arith.constant 0 : index
    %24 = vector.load %arg9[%c0_10, %c0_11] : memref<4x1xf32, #tpu.memory_space<vmem>>, vector<4x1xf32>
    %25 = arith.maximumf %24, %23 : vector<4x1xf32>
    %c0_12 = arith.constant 0 : index
    %c0_13 = arith.constant 0 : index
    %26 = vector.load %arg9[%c0_12, %c0_13] : memref<4x1xf32, #tpu.memory_space<vmem>>, vector<4x1xf32>
    %27 = arith.subf %26, %25 : vector<4x1xf32>
    %28 = math.exp %27 : vector<4x1xf32>
    %29 = vector.broadcast %25 : vector<4x1xf32> to vector<4x128xf32>
    %30 = arith.subf %20, %29 : vector<4x128xf32>
    %31 = math.exp %30 : vector<4x128xf32>
    %cst_14 = arith.constant 0.000000e+00 : f32
    %32 = vector.shape_cast %16 : vector<1x128xi1> to vector<1x128xi1>
    %33 = vector.broadcast %32 : vector<1x128xi1> to vector<4x128xi1>
    %34 = vector.broadcast %cst_14 : f32 to vector<4x128xf32>
    %35 = arith.select %33, %31, %34 : vector<4x128xi1>, vector<4x128xf32>
    %c0_15 = arith.constant 0 : index
    %c0_16 = arith.constant 0 : index
    %36 = vector.load %arg10[%c0_15, %c0_16] : memref<4x1xf32, #tpu.memory_space<vmem>>, vector<4x1xf32>
    %37 = arith.mulf %28, %36 : vector<4x1xf32>
    %cst_17 = arith.constant dense<0.000000e+00> : vector<4xf32>
    %38 = vector.multi_reduction <add>, %35, %cst_17 [1] : vector<4x128xf32> to vector<4xf32>
    %39 = vector.shape_cast %38 : vector<4xf32> to vector<4x1xf32>
    %40 = arith.addf %37, %39 : vector<4x1xf32>
    %c0_18 = arith.constant 0 : index
    %c0_19 = arith.constant 0 : index
    %41 = vector.load %arg10[%c0_18, %c0_19] : memref<4x1xf32, #tpu.memory_space<vmem>>, vector<4x1xf32>
    tpu.vector_store %arg10[%c0_18, %c0_19], %40 {strides = array<i32>} : memref<4x1xf32, #tpu.memory_space<vmem>>, vector<4x1xf32>,
    %c0_20 = arith.constant 0 : index
    %c0_21 = arith.constant 0 : index
    %42 = vector.load %arg11[%c0_20, %c0_21] : memref<4x32xf32, #tpu.memory_space<vmem>>, vector<4x32xf32>
    %43 = vector.broadcast %28 : vector<4x1xf32> to vector<4x32xf32>
    %44 = arith.mulf %43, %42 : vector<4x32xf32>
    %cst_22 = arith.constant dense<0.000000e+00> : vector<4x32xf32>
    %45 = tpu.matmul %35, %3, %cst_22 {dimension_numbers = #tpu.dot_dimension_numbers<[1], [0], [0], [1], [0, 0, 1, 1], [], []>} : vector<4x128xf32>, vector<128x32xf32>, vector<4x32xf32> -> vector<4x32xf32>
    %46 = arith.addf %44, %45 : vector<4x32xf32>
    %c0_23 = arith.constant 0 : index
    %c0_24 = arith.constant 0 : index
    %47 = vector.load %arg11[%c0_23, %c0_24] : memref<4x32xf32, #tpu.memory_space<vmem>>, vector<4x32xf32>
    tpu.vector_store %arg11[%c0_23, %c0_24], %46 {strides = array<i32>} : memref<4x32xf32, #tpu.memory_space<vmem>>, vector<4x32xf32>,
    %c0_25 = arith.constant 0 : index
    %c0_26 = arith.constant 0 : index
    %48 = vector.load %arg9[%c0_25, %c0_26] : memref<4x1xf32, #tpu.memory_space<vmem>>, vector<4x1xf32>
    tpu.vector_store %arg9[%c0_25, %c0_26], %25 {strides = array<i32>} : memref<4x1xf32, #tpu.memory_space<vmem>>, vector<4x1xf32>,
    %c0_i32_27 = arith.constant 0 : i32
    %49 = arith.cmpi eq, %arg1, %c0_i32_27 : i32
    %50 = arith.extui %49 : i1 to i32
    %c0_i32_28 = arith.constant 0 : i32
    %51 = arith.cmpi ne, %50, %c0_i32_28 : i32
    scf.if %51 {
      %c0_29 = arith.constant 0 : index
      %c0_30 = arith.constant 0 : index
      %52 = vector.load %arg9[%c0_29, %c0_30] : memref<4x1xf32, #tpu.memory_space<vmem>>, vector<4x1xf32>
      %c0_31 = arith.constant 0 : index
      %c0_32 = arith.constant 0 : index
      %c0_33 = arith.constant 0 : index
      %53 = vector.load %arg6[%c0_31, %c0_32, %c0_33] : memref<1x4x1xf32, #tpu.memory_space<vmem>>, vector<1x4x1xf32>
      %54 = vector.shape_cast %53 : vector<1x4x1xf32> to vector<4x1xf32>
      %55 = vector.shape_cast %52 : vector<4x1xf32> to vector<1x4x1xf32>
      tpu.vector_store %arg6[%c0_31, %c0_32, %c0_33], %55 {strides = array<i32>} : memref<1x4x1xf32, #tpu.memory_space<vmem>>, vector<1x4x1xf32>,
      %c0_34 = arith.constant 0 : index
      %c0_35 = arith.constant 0 : index
      %56 = vector.load %arg10[%c0_34, %c0_35] : memref<4x1xf32, #tpu.memory_space<vmem>>, vector<4x1xf32>
      %c0_36 = arith.constant 0 : index
      %c0_37 = arith.constant 0 : index
      %c0_38 = arith.constant 0 : index
      %57 = vector.load %arg7[%c0_36, %c0_37, %c0_38] : memref<1x4x1xf32, #tpu.memory_space<vmem>>, vector<1x4x1xf32>
      %58 = vector.shape_cast %57 : vector<1x4x1xf32> to vector<4x1xf32>
      %59 = vector.shape_cast %56 : vector<4x1xf32> to vector<1x4x1xf32>
      tpu.vector_store %arg7[%c0_36, %c0_37, %c0_38], %59 {strides = array<i32>} : memref<1x4x1xf32, #tpu.memory_space<vmem>>, vector<1x4x1xf32>,
      %c0_39 = arith.constant 0 : index
      %c0_40 = arith.constant 0 : index
      %60 = vector.load %arg11[%c0_39, %c0_40] : memref<4x32xf32, #tpu.memory_space<vmem>>, vector<4x32xf32>
      %c0_41 = arith.constant 0 : index
      %c0_42 = arith.constant 0 : index
      %c0_43 = arith.constant 0 : index
      %61 = vector.load %arg8[%c0_41, %c0_42, %c0_43] : memref<1x4x32xf32, #tpu.memory_space<vmem>>, vector<1x4x32xf32>
      %62 = vector.shape_cast %61 : vector<1x4x32xf32> to vector<4x32xf32>
      %63 = vector.shape_cast %60 : vector<4x32xf32> to vector<1x4x32xf32>
      tpu.vector_store %arg8[%c0_41, %c0_42, %c0_43], %63 {strides = array<i32>} : memref<1x4x32xf32, #tpu.memory_space<vmem>>, vector<1x4x32xf32>,
    } else {
    }
    return
  }
  func.func @transform_0(%arg0: i32, %arg1: i32) -> (i32, i32) {
    %c1_i32 = arith.constant 1 : i32
    %0 = arith.muli %arg0, %c1_i32 : i32
    %1 = arith.addi %0, %arg1 : i32
    %c0_i32 = arith.constant 0 : i32
    %c0_i32_0 = arith.constant 0 : i32
    return %1, %c0_i32 : i32, i32
  }
  func.func @transform_1(%arg0: i32, %arg1: i32) -> (i32, i32) {
    %c0_i32 = arith.constant 0 : i32
    %c0_i32_0 = arith.constant 0 : i32
    %c0_i32_1 = arith.constant 0 : i32
    return %c0_i32, %c0_i32_0 : i32, i32
  }
  func.func @transform_2(%arg0: i32, %arg1: i32) -> (i32, i32) {
    %c0_i32 = arith.constant 0 : i32
    %c0_i32_0 = arith.constant 0 : i32
    %c0_i32_1 = arith.constant 0 : i32
    return %c0_i32, %c0_i32_0 : i32, i32
  }
  func.func @transform_3(%arg0: i32, %arg1: i32) -> (i32, i32) {
    %c1_i32 = arith.constant 1 : i32
    %0 = arith.muli %arg0, %c1_i32 : i32
    %1 = arith.addi %0, %arg1 : i32
    %c0_i32 = arith.constant 0 : i32
    %c0_i32_0 = arith.constant 0 : i32
    return %c0_i32, %1 : i32, i32
  }
  func.func @transform_4(%arg0: i32, %arg1: i32) -> (i32, i32, i32) {
    %c0_i32 = arith.constant 0 : i32
    %c0_i32_0 = arith.constant 0 : i32
    %c0_i32_1 = arith.constant 0 : i32
    return %arg0, %c0_i32, %c0_i32_0 : i32, i32, i32
  }
  func.func @transform_5(%arg0: i32, %arg1: i32) -> (i32, i32, i32) {
    %c0_i32 = arith.constant 0 : i32
    %c0_i32_0 = arith.constant 0 : i32
    %c0_i32_1 = arith.constant 0 : i32
    return %arg0, %c0_i32, %c0_i32_0 : i32, i32, i32
  }
  func.func @transform_6(%arg0: i32, %arg1: i32) -> (i32, i32, i32) {
    %c0_i32 = arith.constant 0 : i32
    %c0_i32_0 = arith.constant 0 : i32
    %c0_i32_1 = arith.constant 0 : i32
    return %arg0, %c0_i32, %c0_i32_0 : i32, i32, i32
  }
}

</mosaic_0001>

<llo_original>
// kernel: tpu_custom_call.1
$region0: #{tpu_custom_call.1}
  #allocation0 [shape = 'u32[]', space=smem, size = 0x4, offset = 0x4, fixed_abs, tag = 'smem constant byte address 0x4 - core index']
  #allocation1 [shape = 'u32[144,128]{1,0:T(1,128)}', space=vmem, size = 0x12000, scoped, tag = 'internal scratch']
  #allocation2 [shape = 'f32[4,1]{1,0:T(4,128)}', space=vmem, size = 0x800, scoped, tag = 'scratch operand']
  #allocation3 [shape = 'f32[4,1]{1,0:T(4,128)}', space=vmem, size = 0x800, scoped, tag = 'scratch operand']
  #allocation4 [shape = 'f32[4,32]{1,0:T(4,128)}', space=vmem, size = 0x800, scoped, tag = 'scratch operand']
  %s0 = inlined_call_operand.vmem [shape: f32[256,32], index: 0, kind: input, shape index: {}]
  %s1 = inlined_call_operand.vmem [shape: f32[4,32], index: 1, kind: input, shape index: {}]
  %s2 = inlined_call_operand.vmem [shape: f32[4,1], index: 2, kind: input, shape index: {}]
  %s3 = inlined_call_operand.hbm [shape: f32[4,256], index: 3, kind: output, shape index: {0}]
  %s4 = inlined_call_operand.vmem [shape: f32[2,4,1], index: 4, kind: output, shape index: {1}]
  %s5 = inlined_call_operand.vmem [shape: f32[2,4,1], index: 5, kind: output, shape index: {2}]
  %s6 = inlined_call_operand.hbm [shape: f32[2,4,32], index: 6, kind: output, shape index: {3}]
  %7 = xla_tuple %s3, %s4, %s5, %s6
  %s8 = sld [smem:[#allocation0]]
  $region77: #{tpu_custom_call.1} parent=0
    _
  %s10 = ssub.s32 1, %s8
  %s11 = scalar_select 0, %s10, %s8
  $region1: #{tpu_custom_call.1} parent=0
    #allocation5 [shape = 'u8[4096]{0}', space=vmem, size = 0x1000, scoped, tag = 'output window, operand 0']
    #allocation6 [shape = 's32[2]{0}', space=sflag, size = 0x8, scoped, tag = 'scoped memory for tpu_custom_call.1']
    #allocation7 [shape = 'u8[4096]{0}', space=vmem, size = 0x1000, scoped, tag = 'output window, operand 3']
    #allocation8 [shape = 's32[2]{0}', space=sflag, size = 0x8, scoped, tag = 'scoped memory for tpu_custom_call.1']
    %12 = vsyncpa [#allocation6], 0
    %s13 = scalar_lea.sflag [#allocation6], 1
    %14 = vsyncpa %s13, 0
    %15 = vsyncpa [#allocation8], 0
    %s16 = scalar_lea.sflag [#allocation8], 1
    %17 = vsyncpa %s16, 0
    loop: start=0, step=1, limit=4
    $region2: #{tpu_custom_call.1} parent=1 // loop_pre_header
      _
    $region3: #{tpu_custom_call.1} parent=1 // loop_header
      %s19 = sphi 0, %s23
      %p20 = scmp.ge.s32.totalorder %s19, 4
      %s26 = sphi 0, %s38
      %s27 = sphi 0, %s34
      %s28 = sphi 0, %s26
      %s29 = sphi 0, %s27
      %s30 = sphi 0, %s28
      %s31 = sphi 0, %s29
      %s43 = sphi 0, %s45
      %s46 = sphi 0, %s43
      %s47 = sphi 0, %s46
      %s63 = sphi 0, %s47
      %s67 = sphi 0, %s67
      %s69 = sphi 0, %s67
      %s70 = sphi 0, %s69
      %s84 = sphi 0, %s70
      %s88 = sphi 0, %s88
      %s90 = sphi 0, %s88
      %s91 = sphi 0, %s90
      %s105 = sphi 0, %s91
      %s113 = sphi 0, %s115
      %s116 = sphi 0, %s113
      %s117 = sphi 0, %s116
      %s133 = sphi 0, %s117
      %s139 = sphi 0, %s141
      %s142 = sphi 0, %s139
      %s143 = sphi 0, %s142
      %s159 = sphi 0, %s143
      %s165 = sphi 0, %s167
      %s168 = sphi 0, %s165
      %s169 = sphi 0, %s168
      %s185 = sphi 0, %s169
      %s191 = sphi 0, %s193
      %s194 = sphi 0, %s191
      %s195 = sphi 0, %s194
      %s211 = sphi 0, %s195
    $region4: #{tpu_custom_call.1} parent=1 // loop_header_branch
      %22 = sbr.rel (%p20) target = $region8
    $region5: #{tpu_custom_call.1} parent=1 // loop_body
      %s24 = ssub.s32 %s19, 1
      %s25 = ssub.s32 %s19, 2
      %s32 = sadd.s32 1, %s27
      %p33 = scmp.ge.s32.totalorder %s32, 1
      %s34 = scalar_select %p33, 0, %s32
      %s35 = sadd.s32 1, %s26
      %s36 = scalar_select %p33, %s35, %s26
      %p37 = scmp.ge.s32.totalorder %s36, 2
      %s38 = scalar_select %p37, 0, %s36
      %s39 = sadd.s32 %s26, %s27
      %s40 = sadd.s32 %s38, %s34
      %s41 = ssub.s32 %s39, %s40
      %p42 = scmp.eq.s32.totalorder %s41, 0
      %s44 = sadd.s32 %s43, 1
      %s45 = scalar_select %p42, %s43, %s44
      %p48 = pneg %p42
      %p49 = scmp.eq.s32.totalorder %s19, 1
      %p50 = por %p48, %p49
      %p51 = scmp.ne.s32.totalorder %s43, %s46
      %p52 = scmp.eq.s32.totalorder %s19, 0
      %p53 = por %p51, %p52
      %p54 = scmp.ne.s32.totalorder %s43, %s46
      %p55 = scmp.eq.s32.totalorder %s24, 1
      %p56 = por %p54, %p55
      %p57 = scmp.ne.s32.totalorder %s46, %s47
      %p58 = scmp.eq.s32.totalorder %s24, 0
      %p59 = por %p57, %p58
      %p60 = scmp.ne.s32.totalorder %s46, %s47
      %p61 = scmp.eq.s32.totalorder %s25, 1
      %p62 = por %p60, %p61
      %p64 = scmp.ne.s32.totalorder %s47, %s63
      %p65 = scmp.eq.s32.totalorder %s25, 0
      %p66 = por %p64, %p65
      %s68 = sadd.s32 %s67, 1
      %p71 = scmp.eq.s32.totalorder %s19, 1
      %p72 = scmp.ne.s32.totalorder %s67, %s69
      %p73 = scmp.eq.s32.totalorder %s19, 0
      %p74 = por %p72, %p73
      %p75 = scmp.ne.s32.totalorder %s67, %s69
      %p76 = scmp.eq.s32.totalorder %s24, 1
      %p77 = por %p75, %p76
      %p78 = scmp.ne.s32.totalorder %s69, %s70
      %p79 = scmp.eq.s32.totalorder %s24, 0
      %p80 = por %p78, %p79
      %p81 = scmp.ne.s32.totalorder %s69, %s70
      %p82 = scmp.eq.s32.totalorder %s25, 1
      %p83 = por %p81, %p82
      %p85 = scmp.ne.s32.totalorder %s70, %s84
      %p86 = scmp.eq.s32.totalorder %s25, 0
      %p87 = por %p85, %p86
      %s89 = sadd.s32 %s88, 1
      %p92 = scmp.eq.s32.totalorder %s19, 1
      %p93 = scmp.ne.s32.totalorder %s88, %s90
      %p94 = scmp.eq.s32.totalorder %s19, 0
      %p95 = por %p93, %p94
      %p96 = scmp.ne.s32.totalorder %s88, %s90
      %p97 = scmp.eq.s32.totalorder %s24, 1
      %p98 = por %p96, %p97
      %p99 = scmp.ne.s32.totalorder %s90, %s91
      %p100 = scmp.eq.s32.totalorder %s24, 0
      %p101 = por %p99, %p100
      %p102 = scmp.ne.s32.totalorder %s90, %s91
      %p103 = scmp.eq.s32.totalorder %s25, 1
      %p104 = por %p102, %p103
      %p106 = scmp.ne.s32.totalorder %s91, %s105
      %p107 = scmp.eq.s32.totalorder %s25, 0
      %p108 = por %p106, %p107
      %s109 = sadd.s32 %s26, %s27
      %s110 = sadd.s32 %s38, %s34
      %s111 = ssub.s32 %s109, %s110
      %p112 = scmp.eq.s32.totalorder %s111, 0
      %s114 = sadd.s32 %s113, 1
      %s115 = scalar_select %p112, %s113, %s114
      %p118 = pneg %p112
      %p119 = scmp.eq.s32.totalorder %s19, 1
      %p120 = por %p118, %p119
      %p121 = scmp.ne.s32.totalorder %s113, %s116
      %p122 = scmp.eq.s32.totalorder %s19, 0
      %p123 = por %p121, %p122
      %p124 = scmp.ne.s32.totalorder %s113, %s116
      %p125 = scmp.eq.s32.totalorder %s24, 1
      %p126 = por %p124, %p125
      %p127 = scmp.ne.s32.totalorder %s116, %s117
      %p128 = scmp.eq.s32.totalorder %s24, 0
      %p129 = por %p127, %p128
      %p130 = scmp.ne.s32.totalorder %s116, %s117
      %p131 = scmp.eq.s32.totalorder %s25, 1
      %p132 = por %p130, %p131
      %p134 = scmp.ne.s32.totalorder %s117, %s133
      %p135 = scmp.eq.s32.totalorder %s25, 0
      %p136 = por %p134, %p135
      %s137 = ssub.s32 %s26, %s38
      %p138 = scmp.eq.s32.totalorder %s137, 0
      %s140 = sadd.s32 %s139, 1
      %s141 = scalar_select %p138, %s139, %s140
      %p144 = pneg %p138
      %p145 = scmp.eq.s32.totalorder %s19, 1
      %p146 = por %p144, %p145
      %p147 = scmp.ne.s32.totalorder %s139, %s142
      %p148 = scmp.eq.s32.totalorder %s19, 0
      %p149 = por %p147, %p148
      %p150 = scmp.ne.s32.totalorder %s139, %s142
      %p151 = scmp.eq.s32.totalorder %s24, 1
      %p152 = por %p150, %p151
      %p153 = scmp.ne.s32.totalorder %s142, %s143
      %p154 = scmp.eq.s32.totalorder %s24, 0
      %p155 = por %p153, %p154
      %p156 = scmp.ne.s32.totalorder %s142, %s143
      %p157 = scmp.eq.s32.totalorder %s25, 1
      %p158 = por %p156, %p157
      %p160 = scmp.ne.s32.totalorder %s143, %s159
      %p161 = scmp.eq.s32.totalorder %s25, 0
      %p162 = por %p160, %p161
      %s163 = ssub.s32 %s26, %s38
      %p164 = scmp.eq.s32.totalorder %s163, 0
      %s166 = sadd.s32 %s165, 1
      %s167 = scalar_select %p164, %s165, %s166
      %p170 = pneg %p164
      %p171 = scmp.eq.s32.totalorder %s19, 1
      %p172 = por %p170, %p171
      %p173 = scmp.ne.s32.totalorder %s165, %s168
      %p174 = scmp.eq.s32.totalorder %s19, 0
      %p175 = por %p173, %p174
      %p176 = scmp.ne.s32.totalorder %s165, %s168
      %p177 = scmp.eq.s32.totalorder %s24, 1
      %p178 = por %p176, %p177
      %p179 = scmp.ne.s32.totalorder %s168, %s169
      %p180 = scmp.eq.s32.totalorder %s24, 0
      %p181 = por %p179, %p180
      %p182 = scmp.ne.s32.totalorder %s168, %s169
      %p183 = scmp.eq.s32.totalorder %s25, 1
      %p184 = por %p182, %p183
      %p186 = scmp.ne.s32.totalorder %s169, %s185
      %p187 = scmp.eq.s32.totalorder %s25, 0
      %p188 = por %p186, %p187
      %s189 = ssub.s32 %s26, %s38
      %p190 = scmp.eq.s32.totalorder %s189, 0
      %s192 = sadd.s32 %s191, 1
      %s193 = scalar_select %p190, %s191, %s192
      %p196 = pneg %p190
      %p197 = scmp.eq.s32.totalorder %s19, 1
      %p198 = por %p196, %p197
      %p199 = scmp.ne.s32.totalorder %s191, %s194
      %p200 = scmp.eq.s32.totalorder %s19, 0
      %p201 = por %p199, %p200
      %p202 = scmp.ne.s32.totalorder %s191, %s194
      %p203 = scmp.eq.s32.totalorder %s24, 1
      %p204 = por %p202, %p203
      %p205 = scmp.ne.s32.totalorder %s194, %s195
      %p206 = scmp.eq.s32.totalorder %s24, 0
      %p207 = por %p205, %p206
      %p208 = scmp.ne.s32.totalorder %s194, %s195
      %p209 = scmp.eq.s32.totalorder %s25, 1
      %p210 = por %p208, %p209
      %p212 = scmp.ne.s32.totalorder %s195, %s211
      %p213 = scmp.eq.s32.totalorder %s25, 0
      %p214 = por %p212, %p213
      %p215 = scmp.le.s32.totalorder 1, %s19
      %p216 = scmp.lt.s32.totalorder %s19, 3
      %p217 = pnand %p215, %p216
      %p218 = pneg %p217
      // Predicated region
      $region9: #{tpu_custom_call.1} parent=5 // pred_check
        _
      $region10: #{tpu_custom_call.1} parent=5 // pred_check_branch
        %220 = sbr.rel (%p217) target = $region12
      $region11: #{tpu_custom_call.1} parent=5 // pred_region
        %s221 = ssub.s32 %s19, 1
        // Predicated region
        $region13: #{tpu_custom_call.1} parent=11 // pred_check
          %p222 = pneg %p80
        $region14: #{tpu_custom_call.1} parent=11 // pred_check_branch
          %224 = sbr.rel (%p222) target = $region16
        $region15: #{tpu_custom_call.1} parent=11 // pred_region
          _
        $region16: #{tpu_custom_call.1} parent=11 // pred_fallthru
          _
        // Predicated region
        $region17: #{tpu_custom_call.1} parent=11 // pred_check
          %p225 = pneg %p101
        $region18: #{tpu_custom_call.1} parent=11 // pred_check_branch
          %227 = sbr.rel (%p225) target = $region20
        $region19: #{tpu_custom_call.1} parent=11 // pred_region
          _
        $region20: #{tpu_custom_call.1} parent=11 // pred_fallthru
          _
      $region12: #{tpu_custom_call.1} parent=5 // pred_fallthru
        _
      %p228 = scmp.lt.s32.totalorder %s19, 2
      // Predicated region
      $region21: #{tpu_custom_call.1} parent=5 // pred_check
        %p229 = pneg %p228
      $region22: #{tpu_custom_call.1} parent=5 // pred_check_branch
        %231 = sbr.rel (%p229) target = $region24
      $region23: #{tpu_custom_call.1} parent=5 // pred_region
        // Predicated region
        $region25: #{tpu_custom_call.1} parent=23 // pred_check
          %p232 = pneg %p53
        $region26: #{tpu_custom_call.1} parent=23 // pred_check_branch
          %234 = sbr.rel (%p232) target = $region28
        $region27: #{tpu_custom_call.1} parent=23 // pred_region
          %s235 = sadd.s32 %s26, %s27
          %s236 = smul.u32 16, %s235
          %p237 = scmp.lt.s32.totalorder %s236, 31
          %s238 = scalar_select %p237, %s236, 31
          %s239 = smul.addr %s238, 8
          %s240 = scalar_lea.vmem %s0, %s239
          %s241 = sadd.s32 %s26, %s27
          %s242 = smul.u32 16, %s241
        $region28: #{tpu_custom_call.1} parent=23 // pred_fallthru
          _
      $region24: #{tpu_custom_call.1} parent=5 // pred_fallthru
        _
      %p243 = scmp.le.s32.totalorder 1, %s19
      %p244 = scmp.lt.s32.totalorder %s19, 3
      %p245 = pnand %p243, %p244
      %p246 = pneg %p245
      // Predicated region
      $region29: #{tpu_custom_call.1} parent=5 // pred_check
        _
      $region30: #{tpu_custom_call.1} parent=5 // pred_check_branch
        %248 = sbr.rel (%p245) target = $region32
      $region31: #{tpu_custom_call.1} parent=5 // pred_region
        %s249 = ssub.s32 %s19, 1
        %s250 = sadd.s32 %s28, %s29
        %s251 = smul.u32 16, %s250
        %p252 = scmp.lt.s32.totalorder %s251, 31
        %s253 = scalar_select %p252, %s251, 31
        %s254 = smul.addr %s253, 8
        %s255 = scalar_lea.vmem %s0, %s254
        %p256 = pneg %p59
        %p257 = pneg %p56
        %p258 = pneg %p80
        %p259 = pneg %p77
        %p260 = pneg %p101
        %p261 = pneg %p98
        %p262 = pneg %p129
        %p263 = pneg %p126
        %s264 = sand.u32 %s116, 1
        %s265 = scalar_lea.sflag [#allocation6], %s264
        %s266 = sand.u32 %s116, 1
        %s267 = smul.addr %s266, 4
        %s268 = scalar_lea.vmem [#allocation5], %s267
        %p269 = pneg %p155
        %p270 = pneg %p152
        %p271 = scmp.lt.s32.totalorder %s28, 1
        %s272 = scalar_select %p271, %s28, 1
        %s273 = smul.addr %s272, 4
        %s274 = scalar_lea.vmem %s4, %s273
        %p275 = pneg %p181
        %p276 = pneg %p178
        %p277 = scmp.lt.s32.totalorder %s28, 1
        %s278 = scalar_select %p277, %s28, 1
        %s279 = smul.addr %s278, 4
        %s280 = scalar_lea.vmem %s5, %s279
        %p281 = pneg %p207
        %p282 = pneg %p204
        %s283 = sand.u32 %s194, 1
        %s284 = scalar_lea.sflag [#allocation8], %s283
        %s285 = sand.u32 %s194, 1
        %s286 = smul.addr %s285, 4
        %s287 = scalar_lea.vmem [#allocation7], %s286
        %s288 = sadd.s32 %s28, %s29
        %s289 = smul.u32 16, %s288
        %p290 = scmp.lt.s32.totalorder %s289, 31
        %s291 = scalar_select %p290, %s289, 31
        %s292 = smul.addr %s291, 8
        %s293 = scalar_lea.vmem %s0, %s292
        %s294 = sadd.s32 %s28, %s29
        %s295 = smul.u32 16, %s294
        %s296 = sadd.s32 %s28, %s29
        %p297 = scmp.lt.s32.totalorder %s28, 1
        %s298 = scalar_select %p297, %s28, 1
        %s299 = smul.addr %s298, 4
        %s300 = scalar_lea.vmem %s4, %s299
        %p301 = scmp.lt.s32.totalorder %s28, 1
        %s302 = scalar_select %p301, %s28, 1
        %s303 = smul.addr %s302, 4
        %s304 = scalar_lea.vmem %s5, %s303
        %p305 = scmp.eq.s32.totalorder %s29, 0
        // Predicated region
        $region33: #{tpu_custom_call.1} parent=31 // pred_check
          %p306 = pneg %p305
        $region34: #{tpu_custom_call.1} parent=31 // pred_check_branch
          %308 = sbr.rel (%p306) target = $region36
        $region35: #{tpu_custom_call.1} parent=31 // pred_region
          %vm309 = vcmask 3072
          %310 = vst.msk [vmem:[#allocation2] sm:$0xf] %vm309, -1e+30
          %311 = vst.msk [vmem:[#allocation3] sm:$0xf] %vm309, 0.0
          %vm312 = vcmask 257024
          %313 = vst.msk [vmem:[#allocation4] sm:$0xf] %vm312, 0.0
        $region36: #{tpu_custom_call.1} parent=31 // pred_fallthru
          _
        %v314 = vld [vmem:[%s293] sm:$0xff]
        %v315 = vld [vmem:[%s293 + $0x8] sm:$0xff]
        %v316 = vld [vmem:[%s293 + $0x10] sm:$0xff]
        %v317 = vld [vmem:[%s293 + $0x18] sm:$0xff]
        %v318 = vld [vmem:[%s293 + $0x20] sm:$0xff]
        %v319 = vld [vmem:[%s293 + $0x28] sm:$0xff]
        %v320 = vld [vmem:[%s293 + $0x30] sm:$0xff]
        %v321 = vld [vmem:[%s293 + $0x38] sm:$0xff]
        %v322 = vld [vmem:[%s293 + $0x40] sm:$0xff]
        %v323 = vld [vmem:[%s293 + $0x48] sm:$0xff]
        %v324 = vld [vmem:[%s293 + $0x50] sm:$0xff]
        %v325 = vld [vmem:[%s293 + $0x58] sm:$0xff]
        %v326 = vld [vmem:[%s293 + $0x60] sm:$0xff]
        %v327 = vld [vmem:[%s293 + $0x68] sm:$0xff]
        %v328 = vld [vmem:[%s293 + $0x70] sm:$0xff]
        %v329 = vld [vmem:[%s293 + $0x78] sm:$0xff]
        %v330 = vld [vmem:[%s1] sm:$0xf]
        %v331 = vld [vmem:[%s2] sm:$0xf]
        %333 = vset.pattern.permute.xlu0 0
        %334 = vperm.xlu0 %333, %v331
        %v335 = vpop.permute.xlu0 %334
        %vm337 = vcmask 261120
        %v339 = vsel %vm337, %v330, 0
        %v342 = vsel %vm337, %v314, 0
        %v345 = vsel %vm337, %v315, 0
        %v348 = vsel %vm337, %v316, 0
        %v351 = vsel %vm337, %v317, 0
        %v354 = vsel %vm337, %v318, 0
        %v357 = vsel %vm337, %v319, 0
        %v360 = vsel %vm337, %v320, 0
        %v363 = vsel %vm337, %v321, 0
        %v366 = vsel %vm337, %v322, 0
        %v369 = vsel %vm337, %v323, 0
        %v372 = vsel %vm337, %v324, 0
        %v375 = vsel %vm337, %v325, 0
        %v378 = vsel %vm337, %v326, 0
        %v381 = vsel %vm337, %v327, 0
        %v384 = vsel %vm337, %v328, 0
        %v387 = vsel %vm337, %v329, 0
        %389 = vmatprep.subr.mxu0 0.0
        %390 = vmatpush1.xpose.msra.mxu0 %v342
        %391 = vmatprep.subr.mxu0 0.0
        %392 = vmatpush1.xpose.msra.mxu0 %v345
        %393 = vmatprep.subr.mxu0 0.0
        %394 = vmatpush1.xpose.msra.mxu0 %v348
        %395 = vmatprep.subr.mxu0 0.0
        %396 = vmatpush1.xpose.msra.mxu0 %v351
        %397 = vmatprep.subr.mxu0 0.0
        %398 = vmatpush1.xpose.msra.mxu0 %v354
        %399 = vmatprep.subr.mxu0 0.0
        %400 = vmatpush1.xpose.msra.mxu0 %v357
        %401 = vmatprep.subr.mxu0 0.0
        %402 = vmatpush1.xpose.msra.mxu0 %v360
        %403 = vmatprep.subr.mxu0 0.0
        %404 = vmatpush1.xpose.msra.mxu0 %v363
        %405 = vmatprep.subr.mxu0 0.0
        %406 = vmatpush1.xpose.msra.mxu0 %v366
        %407 = vmatprep.subr.mxu0 0.0
        %408 = vmatpush1.xpose.msra.mxu0 %v369
        %409 = vmatprep.subr.mxu0 0.0
        %410 = vmatpush1.xpose.msra.mxu0 %v372
        %411 = vmatprep.subr.mxu0 0.0
        %412 = vmatpush1.xpose.msra.mxu0 %v375
        %413 = vmatprep.subr.mxu0 0.0
        %414 = vmatpush1.xpose.msra.mxu0 %v378
        %415 = vmatprep.subr.mxu0 0.0
        %416 = vmatpush1.xpose.msra.mxu0 %v381
        %417 = vmatprep.subr.mxu0 0.0
        %418 = vmatpush1.xpose.msra.mxu0 %v384
        %419 = vmatprep.subr.mxu0 0.0
        %420 = vmatpush1.xpose.msra.mxu0 %v387
        %421 = vmatprep.subr.mxu0 0.0
        %422 = vmatpush1.xpose.msra.mxu0 0.0
        %423 = vmatprep.subr.mxu0 0.0
        %424 = vmatpush1.xpose.msra.mxu0 0.0
        %425 = vmatprep.subr.mxu0 0.0
        %426 = vmatpush1.xpose.msra.mxu0 0.0
        %427 = vmatprep.subr.mxu0 0.0
        %428 = vmatpush1.xpose.msra.mxu0 0.0
        %429 = vmatprep.subr.mxu0 0.0
        %430 = vmatpush1.xpose.msra.mxu0 0.0
        %431 = vmatprep.subr.mxu0 0.0
        %432 = vmatpush1.xpose.msra.mxu0 0.0
        %433 = vmatprep.subr.mxu0 0.0
        %434 = vmatpush1.xpose.msra.mxu0 0.0
        %435 = vmatprep.subr.mxu0 0.0
        %436 = vmatpush1.xpose.msra.mxu0 0.0
        %437 = vmatprep.subr.mxu0 0.0
        %438 = vmatpush1.xpose.msra.mxu0 0.0
        %439 = vmatprep.subr.mxu0 0.0
        %440 = vmatpush1.xpose.msra.mxu0 0.0
        %441 = vmatprep.subr.mxu0 0.0
        %442 = vmatpush1.xpose.msra.mxu0 0.0
        %443 = vmatprep.subr.mxu0 0.0
        %444 = vmatpush1.xpose.msra.mxu0 0.0
        %445 = vmatprep.subr.mxu0 0.0
        %446 = vmatpush1.xpose.msra.mxu0 0.0
        %447 = vmatprep.subr.mxu0 0.0
        %448 = vmatpush1.xpose.msra.mxu0 0.0
        %449 = vmatprep.subr.mxu0 0.0
        %450 = vmatpush1.xpose.msra.mxu0 0.0
        %451 = vmatprep.subr.mxu0 0.0
        %452 = vmatpush1.xpose.msra.mxu0 0.0
        %453 = vmatprep.mubr.f32.mxu0 0.0
        %454 = vmatmul.mubr.f32.gmra.mrb[0].mxu0 %v339
        %v455 = vpop.f32.mrb[0].mxu0
        %v456 = vadd.f32 %v335, %v455
        %v457 = vpop.f32.mrb[0].mxu0
        %458 = vdwg.mxu0
        %v459 = vlaneseq
        %v460 = vand.u32 %v459, 127
        %s461 = sadd.s32 %s28, %s29
        %s462 = smul.u32 %s461, 128
        %v463 = vstv %s462
        %v464 = vadd.s32 %v460, %v463
        %vm465 = vcmp.lt.s32.totalorder %v464, 8
        %v466 = vsel %vm465, 1, 0
        %vm467 = vcmp.eq.s32.totalorder %v466, 1
        %v468 = vsel %vm467, %v456, -1e+30
        %469 = vst [vmem:[%s268] sm:$0xf] %v468
        %vm470 = vcmask 1043456
        %v471 = vsel %vm470, %v468, -inf
        %472 = vmax.xlane.f32.xlu0 %v471
        %v473 = vpop.xlane.xlu0 %472
        %v474 = vld [vmem:[#allocation2] sm:$0xf]
        %v475 = vmax.f32 %v474, %v473
        %v476 = vsub.f32 %v474, %v475
        %v477 = vmul.f32 %v476, 1.442695
        %v478 = vpow.pop %v477
        %480 = vset.pattern.permute.xlu0 0
        %481 = vperm.xlu0 %480, %v475
        %v482 = vpop.permute.xlu0 %481
        %v484 = vsub.f32 %v468, %v482
        %v485 = vmul.f32 %v484, 1.442695
        %v486 = vpow.pop %v485
        %v487 = vsel %vm467, %v486, 0.0
        %v488 = vld [vmem:[#allocation3] sm:$0xf]
        %v489 = vmul.f32 %v478, %v488
        %v490 = vsel %vm470, %v487, 0.0
        %491 = vadd.xlane.f32.xlu0 %v490
        %v492 = vpop.xlane.xlu0 %491
        %v493 = vadd.f32 %v489, %v492
        %vm494 = vcmask 3072
        %495 = vst.msk [vmem:[#allocation3] sm:$0xf] %vm494, %v493
        %v496 = vld [vmem:[#allocation4] sm:$0xf]
        %498 = vset.pattern.permute.xlu0 0
        %499 = vperm.xlu0 %498, %v478
        %v500 = vpop.permute.xlu0 %499
        %v502 = vmul.f32 %v500, %v496
        %503 = vmatprep.subr.mxu0 0.0
        %504 = vmatpush1.msra.mxu0 %v314
        %505 = vmatprep.subr.mxu0 0.0
        %506 = vmatpush1.msra.mxu0 %v315
        %507 = vmatprep.subr.mxu0 0.0
        %508 = vmatpush1.msra.mxu0 %v316
        %509 = vmatprep.subr.mxu0 0.0
        %510 = vmatpush1.msra.mxu0 %v317
        %511 = vmatprep.subr.mxu0 0.0
        %512 = vmatpush1.msra.mxu0 %v318
        %513 = vmatprep.subr.mxu0 0.0
        %514 = vmatpush1.msra.mxu0 %v319
        %515 = vmatprep.subr.mxu0 0.0
        %516 = vmatpush1.msra.mxu0 %v320
        %517 = vmatprep.subr.mxu0 0.0
        %518 = vmatpush1.msra.mxu0 %v321
        %519 = vmatprep.subr.mxu0 0.0
        %520 = vmatpush1.msra.mxu0 %v322
        %521 = vmatprep.subr.mxu0 0.0
        %522 = vmatpush1.msra.mxu0 %v323
        %523 = vmatprep.subr.mxu0 0.0
        %524 = vmatpush1.msra.mxu0 %v324
        %525 = vmatprep.subr.mxu0 0.0
        %526 = vmatpush1.msra.mxu0 %v325
        %527 = vmatprep.subr.mxu0 0.0
        %528 = vmatpush1.msra.mxu0 %v326
        %529 = vmatprep.subr.mxu0 0.0
        %530 = vmatpush1.msra.mxu0 %v327
        %531 = vmatprep.subr.mxu0 0.0
        %532 = vmatpush1.msra.mxu0 %v328
        %533 = vmatprep.subr.mxu0 0.0
        %534 = vmatpush1.msra.mxu0 %v329
        %535 = vmatprep.subr.mxu0 0.0
        %536 = vmatpush1.msra.mxu0 0.0
        %537 = vmatprep.subr.mxu0 0.0
        %538 = vmatpush1.msra.mxu0 0.0
        %539 = vmatprep.subr.mxu0 0.0
        %540 = vmatpush1.msra.mxu0 0.0
        %541 = vmatprep.subr.mxu0 0.0
        %542 = vmatpush1.msra.mxu0 0.0
        %543 = vmatprep.subr.mxu0 0.0
        %544 = vmatpush1.msra.mxu0 0.0
        %545 = vmatprep.subr.mxu0 0.0
        %546 = vmatpush1.msra.mxu0 0.0
        %547 = vmatprep.subr.mxu0 0.0
        %548 = vmatpush1.msra.mxu0 0.0
        %549 = vmatprep.subr.mxu0 0.0
        %550 = vmatpush1.msra.mxu0 0.0
        %551 = vmatprep.subr.mxu0 0.0
        %552 = vmatpush1.msra.mxu0 0.0
        %553 = vmatprep.subr.mxu0 0.0
        %554 = vmatpush1.msra.mxu0 0.0
        %555 = vmatprep.subr.mxu0 0.0
        %556 = vmatpush1.msra.mxu0 0.0
        %557 = vmatprep.subr.mxu0 0.0
        %558 = vmatpush1.msra.mxu0 0.0
        %559 = vmatprep.subr.mxu0 0.0
        %560 = vmatpush1.msra.mxu0 0.0
        %561 = vmatprep.subr.mxu0 0.0
        %562 = vmatpush1.msra.mxu0 0.0
        %563 = vmatprep.subr.mxu0 0.0
        %564 = vmatpush1.msra.mxu0 0.0
        %565 = vmatprep.subr.mxu0 0.0
        %566 = vmatpush1.msra.mxu0 0.0
        %567 = vmatprep.mubr.f32.mxu0 0.0
        %568 = vmatmul.mubr.f32.gmra.mrb[0].mxu0 %v487
        %v569 = vpop.f32.mrb[0].mxu0
        %v570 = vadd.f32 0.0, %v569
        %v571 = vpop.f32.mrb[0].mxu0
        %572 = vdwg.mxu0
        %v573 = vadd.f32 %v502, %v570
        %vm574 = vcmask 257024
        %575 = vst.msk [vmem:[#allocation4] sm:$0xf] %vm574, %v573
        %576 = vst.msk [vmem:[#allocation2] sm:$0xf] %vm494, %v475
        // Predicated region
        $region37: #{tpu_custom_call.1} parent=31 // pred_check
          %p577 = pneg %p305
        $region38: #{tpu_custom_call.1} parent=31 // pred_check_branch
          %579 = sbr.rel (%p577) target = $region40
        $region39: #{tpu_custom_call.1} parent=31 // pred_region
          %v580 = vld [vmem:[#allocation2] sm:$0xf]
          %581 = vst.msk [vmem:[%s300] sm:$0xf] %vm494, %v580
          %v582 = vld [vmem:[#allocation3] sm:$0xf]
          %583 = vst.msk [vmem:[%s304] sm:$0xf] %vm494, %v582
          %v584 = vld [vmem:[#allocation4] sm:$0xf]
          %585 = vst.msk [vmem:[%s287] sm:$0xf] %vm574, %v584
        $region40: #{tpu_custom_call.1} parent=31 // pred_fallthru
          _
        %s586 = sand.u32 %s116, 1
        %s587 = scalar_lea.sflag [#allocation6], %s586
        %s588 = sand.u32 %s116, 1
        %s589 = smul.addr %s588, 4
        %s590 = scalar_lea.vmem [#allocation5], %s589
        %p591 = scmp.lt.s32.totalorder %s28, 1
        %s592 = scalar_select %p591, %s28, 1
        %s593 = smul.addr %s592, 4
        %s594 = scalar_lea.vmem %s4, %s593
        %p595 = scmp.lt.s32.totalorder %s28, 1
        %s596 = scalar_select %p595, %s28, 1
        %s597 = smul.addr %s596, 4
        %s598 = scalar_lea.vmem %s5, %s597
        %s599 = sand.u32 %s194, 1
        %s600 = scalar_lea.sflag [#allocation8], %s599
        %s601 = sand.u32 %s194, 1
        %s602 = smul.addr %s601, 4
        %s603 = scalar_lea.vmem [#allocation7], %s602
        // Predicated region
        $region41: #{tpu_custom_call.1} parent=31 // pred_check
          %p604 = pneg %p126
        $region42: #{tpu_custom_call.1} parent=31 // pred_check_branch
          %606 = sbr.rel (%p604) target = $region44
        $region43: #{tpu_custom_call.1} parent=31 // pred_region
          %s607 = sadd.s32 %s28, %s29
          %s609 = ssub.s32 64, 64
          %610 = vsyncadd %s587, %s609
          %s611 = smul.addr %s607, 64
          %s612 = scalar_lea.hbm %s3, %s611
          %s614 = sshll.u32 %s590, 4
          %s615 = int_to_ptr.vmem [resolvable:$true] %s614
          %617 = dma.vmem_to_hbm [thread:$0]  %s615, 64, %s612, %s587
        $region44: #{tpu_custom_call.1} parent=31 // pred_fallthru
          _
        // Predicated region
        $region45: #{tpu_custom_call.1} parent=31 // pred_check
          %p618 = pneg %p152
        $region46: #{tpu_custom_call.1} parent=31 // pred_check_branch
          %620 = sbr.rel (%p618) target = $region48
        $region47: #{tpu_custom_call.1} parent=31 // pred_region
          _
        $region48: #{tpu_custom_call.1} parent=31 // pred_fallthru
          _
        // Predicated region
        $region49: #{tpu_custom_call.1} parent=31 // pred_check
          %p621 = pneg %p178
        $region50: #{tpu_custom_call.1} parent=31 // pred_check_branch
          %623 = sbr.rel (%p621) target = $region52
        $region51: #{tpu_custom_call.1} parent=31 // pred_region
          _
        $region52: #{tpu_custom_call.1} parent=31 // pred_fallthru
          _
        // Predicated region
        $region53: #{tpu_custom_call.1} parent=31 // pred_check
          %p624 = pneg %p204
        $region54: #{tpu_custom_call.1} parent=31 // pred_check_branch
          %626 = sbr.rel (%p624) target = $region56
        $region55: #{tpu_custom_call.1} parent=31 // pred_region
          %s628 = ssub.s32 64, 64
          %629 = vsyncadd %s600, %s628
          %s630 = smul.addr %s28, 64
          %s631 = scalar_lea.hbm %s6, %s630
          %s633 = sshll.u32 %s603, 4
          %s634 = int_to_ptr.vmem [resolvable:$true] %s633
          %636 = dma.vmem_to_hbm [thread:$0]  %s634, 64, %s631, %s600
        $region56: #{tpu_custom_call.1} parent=31 // pred_fallthru
          _
      $region32: #{tpu_custom_call.1} parent=5 // pred_fallthru
        _
      %p637 = scmp.le.s32.totalorder 2, %s19
      // Predicated region
      $region57: #{tpu_custom_call.1} parent=5 // pred_check
        %p638 = pneg %p637
      $region58: #{tpu_custom_call.1} parent=5 // pred_check_branch
        %640 = sbr.rel (%p638) target = $region60
      $region59: #{tpu_custom_call.1} parent=5 // pred_region
        %s641 = ssub.s32 %s19, 2
        // Predicated region
        $region61: #{tpu_custom_call.1} parent=59 // pred_check
          %p642 = pneg %p132
        $region62: #{tpu_custom_call.1} parent=59 // pred_check_branch
          %644 = sbr.rel (%p642) target = $region64
        $region63: #{tpu_custom_call.1} parent=59 // pred_region
          %s645 = sand.u32 %s117, 1
          %s646 = scalar_lea.sflag [#allocation6], %s645
          %s647 = sand.u32 %s117, 1
          %s648 = smul.addr %s647, 4
          %s649 = scalar_lea.vmem [#allocation5], %s648
          %650 = dma.done %s646, 64
        $region64: #{tpu_custom_call.1} parent=59 // pred_fallthru
          _
        // Predicated region
        $region65: #{tpu_custom_call.1} parent=59 // pred_check
          %p651 = pneg %p158
        $region66: #{tpu_custom_call.1} parent=59 // pred_check_branch
          %653 = sbr.rel (%p651) target = $region68
        $region67: #{tpu_custom_call.1} parent=59 // pred_region
          %p654 = scmp.lt.s32.totalorder %s30, 1
          %s655 = scalar_select %p654, %s30, 1
          %s656 = smul.addr %s655, 4
          %s657 = scalar_lea.vmem %s4, %s656
        $region68: #{tpu_custom_call.1} parent=59 // pred_fallthru
          _
        // Predicated region
        $region69: #{tpu_custom_call.1} parent=59 // pred_check
          %p658 = pneg %p184
        $region70: #{tpu_custom_call.1} parent=59 // pred_check_branch
          %660 = sbr.rel (%p658) target = $region72
        $region71: #{tpu_custom_call.1} parent=59 // pred_region
          %p661 = scmp.lt.s32.totalorder %s30, 1
          %s662 = scalar_select %p661, %s30, 1
          %s663 = smul.addr %s662, 4
          %s664 = scalar_lea.vmem %s5, %s663
        $region72: #{tpu_custom_call.1} parent=59 // pred_fallthru
          _
        // Predicated region
        $region73: #{tpu_custom_call.1} parent=59 // pred_check
          %p665 = pneg %p210
        $region74: #{tpu_custom_call.1} parent=59 // pred_check_branch
          %667 = sbr.rel (%p665) target = $region76
        $region75: #{tpu_custom_call.1} parent=59 // pred_region
          %s668 = sand.u32 %s195, 1
          %s669 = scalar_lea.sflag [#allocation8], %s668
          %s670 = sand.u32 %s195, 1
          %s671 = smul.addr %s670, 4
          %s672 = scalar_lea.vmem [#allocation7], %s671
          %673 = dma.done %s669, 64
        $region76: #{tpu_custom_call.1} parent=59 // pred_fallthru
          _
      $region60: #{tpu_custom_call.1} parent=5 // pred_fallthru
        _
    $region6: #{tpu_custom_call.1} parent=1 // loop_footer
      %s23 = sadd.s32 1, %s19
    $region7: #{tpu_custom_call.1} parent=1 // loop_footer_branch
      %18 = sbr.rel target = $region3
    $region8: #{tpu_custom_call.1} parent=1 // loop_exit
      _
    %674 = vsyncpa [#allocation6], 1
    %s675 = scalar_lea.sflag [#allocation6], 1
    %676 = vsyncpa %s675, 1
    %677 = vsyncpa [#allocation8], 1
    %s678 = scalar_lea.sflag [#allocation8], 1
    %679 = vsyncpa %s678, 1

</llo_original>
